<compile_context>
chip_gen: v7x
topology: tpu7x:2x2x1
jax: 0.10.0
libtpu: 0.0.40
codegen_flags: <defaults>
</compile_context>

<pallas_src>
import functools

import numpy as np
import jax
import jax.numpy as jnp
from jax import lax
from jax.experimental import pallas as pl
from jax.experimental.pallas import tpu as pltpu

# Finite "unreachable" sentinel. Python float -> jaxpr literal (never a captured
# jax.Array constant). Real distances are <= N << 0.5 * _BIG.
_BIG = 1.0e9
_UNREACH_THRESH = 0.5 * _BIG


def _round_up(x, m):
    return (x + m - 1) // m * m


def distmask_kernel(n_real, unroll, d_ref, logits_ref, o_ref):
    """One graph per grid step.

    d_ref:      (NR, NC) padded initial distances (0 diag, 1 edge, _BIG otherwise)
    logits_ref: (2, NC)  gumbel-perturbed mask logits (padded columns force mask = 0)
    o_ref:      (NR, NC) masked all-pairs shortest-path matrix
    Only k in [0, n_real) are valid pivot nodes.
    """
    nr, nc = d_ref.shape

    # Hoisted once (JAX does not CSE broadcasts/iotas inside the loop).
    lane_ids = lax.broadcasted_iota(jnp.int32, (1, nc), 1)   # lane (column) ids
    sub_ids = lax.broadcasted_iota(jnp.int32, (nr, 1), 0)    # sublane (row) ids

    # Register-carried Floyd-Warshall: the matrix lives in vregs across the whole
    # (unrolled) k loop — no VMEM round trip per pivot.
    def body(k, d):
        # Exact extraction of column k / row k via select + min reduce (VPU/XLU).
        # d is finite (sentinel, not inf) and entries never exceed _BIG, so the min
        # returns exactly d[:, k] / d[k, :].
        col_k = jnp.min(jnp.where(lane_ids == k, d, _BIG), axis=1, keepdims=True)  # (nr, 1)
        row_k = jnp.min(jnp.where(sub_ids == k, d, _BIG), axis=0, keepdims=True)   # (1, nc)
        return jnp.minimum(d, col_k + row_k)   # min-plus relax for pivot k

    d = lax.fori_loop(0, n_real, body, d_ref[...], unroll=unroll)

    # Hard gumbel-softmax over 2 classes: one-hot column 0 == 1 iff logit0 >= logit1.
    mask = (logits_ref[0:1, :] >= logits_ref[1:2, :]).astype(jnp.float32)   # (1, nc)

    # Single fused writeback: restore +inf for unreachable entries, apply column mask.
    d = jnp.where(d >= _UNREACH_THRESH, jnp.inf, d)
    o_ref[...] = d * mask


@functools.partial(jax.jit, static_argnames=("n_real",))
def _distmask_padded(d0p, logits_p, *, n_real):
    b, nr, nc = d0p.shape
    # Full unroll is right at small N (LLO scheduling visibility); cap it for large N
    # to keep instruction memory / compile time bounded on a latency-bound chain.
    unroll = n_real if n_real <= 128 else 8

    # Double-buffered blocks: 2x (d in) + 2x (d out) + 2x (logits), plus slack.
    block_bytes = 4 * (2 * nr * nc + 2 * nr * nc + 2 * 2 * nc)
    vmem_limit = int(min(max(block_bytes + (1 << 20), 32 << 20), 64 << 20))

    return pl.pallas_call(
        functools.partial(distmask_kernel, n_real, unroll),
        out_shape=jax.ShapeDtypeStruct((b, nr, nc), jnp.float32),
        grid=(b,),
        in_specs=[
            pl.BlockSpec((None, nr, nc), lambda i: (i, 0, 0)),
            pl.BlockSpec((None, 2, nc), lambda i: (i, 0, 0)),
        ],
        out_specs=pl.BlockSpec((None, nr, nc), lambda i: (i, 0, 0)),
        compiler_params=pltpu.CompilerParams(
            dimension_semantics=("parallel",),
            vmem_limit_bytes=vmem_limit,
        ),
    )(d0p, logits_p)


def distmask_forward_batched(adj_b, mask_weight, gumbel_key, tau=1.0):
    """adj_b: (B, N, N) {0,1} adjacency; mask_weight: (N, 2) embedding weights.

    Equivalent to running the module forward once per graph (fresh gumbel noise per
    graph, as each forward() call draws new noise)."""
    B, N, _ = adj_b.shape
    assert mask_weight.shape == (N, 2), "output_dim must equal num_nodes"

    # Lane-dense padding: sublanes -> multiple of 8, lanes -> multiple of 128.
    NR = _round_up(N, 8)
    NC = _round_up(N, 128)

    # directed=False: symmetrize; unit edge weights; 0 diagonal; no edge -> sentinel.
    adj_sym = jnp.maximum(adj_b, jnp.swapaxes(adj_b, 1, 2)).astype(jnp.float32)
    eye = jnp.eye(N, dtype=bool)[None]
    d0 = jnp.where(eye, 0.0, jnp.where(adj_sym > 0, 1.0, _BIG)).astype(jnp.float32)
    # Padded rows/cols are "unreachable" (sentinel), semantically inert for FW.
    d0p = jnp.full((B, NR, NC), _BIG, dtype=jnp.float32).at[:, :N, :N].set(d0)

    # Gumbel perturbation (stochastic part of gumbel_softmax) as glue; the hard
    # argmax / straight-through forward value is computed in the kernel.
    g = jax.random.gumbel(gumbel_key, (B, N, 2), dtype=jnp.float32)
    logits_t = jnp.swapaxes((mask_weight[None] + g) / tau, 1, 2)   # (B, 2, N)
    # Padded columns get logits forcing mask = 0 (row0 < row1).
    logits_p = jnp.zeros((B, 2, NC), jnp.float32).at[:, 1, :].set(1.0)
    logits_p = logits_p.at[:, :, :N].set(logits_t)

    out_p = _distmask_padded(d0p, logits_p, n_real=N)
    return out_p[:, :N, :N], logits_t


def distmask_forward(adj, mask_weight, gumbel_key, tau=1.0):
    """Single-graph convenience wrapper matching the module's forward signature."""
    out, logits_t = distmask_forward_batched(adj[None], mask_weight, gumbel_key, tau)
    return out[0], logits_t[0]


def _reference(d0_np, logits_t_np):
    d = d0_np.copy()
    n = d.shape[0]
    for k in range(n):
        d = np.minimum(d, d[:, k:k + 1] + d[k:k + 1, :])
    mask = (logits_t_np[0] >= logits_t_np[1]).astype(np.float32)
    return d * mask[None, :]


if __name__ == "__main__":
    N = 16   # num_nodes == output_dim (forward's broadcast requires this)
    B = 2    # graphs batched onto the "parallel" grid axis
    key = jax.random.PRNGKey(0)
    k_w, k_g = jax.random.split(key, 2)

    # Deterministic connected graphs.
    adj_np = np.zeros((B, N, N), dtype=np.float32)
    # Graph 0: ring + chords.
    for i in range(N):
        adj_np[0, i, (i + 1) % N] = 1.0
        adj_np[0, (i + 1) % N, i] = 1.0
    for a, b in [(0, 7), (3, 12), (5, 10), (2, 14)]:
        adj_np[0, a, b] = 1.0
        adj_np[0, b, a] = 1.0
    # Graph 1: path + different chords.
    for i in range(N - 1):
        adj_np[1, i, i + 1] = 1.0
        adj_np[1, i + 1, i] = 1.0
    for a, b in [(0, 15), (4, 11), (2, 9), (6, 13)]:
        adj_np[1, a, b] = 1.0
        adj_np[1, b, a] = 1.0
    adj = jnp.asarray(adj_np)

    # nn.Embedding(output_dim, 2, _weight=torch.log(torch.rand(output_dim, 2)))
    mask_weight = jnp.log(jax.random.uniform(k_w, (N, 2), dtype=jnp.float32))

    out, logits_t = distmask_forward_batched(adj, mask_weight, k_g)
    out = jax.block_until_ready(out)

    # Pure-numpy reference (graphs are connected, so all real distances are finite).
    eye = np.eye(N, dtype=bool)
    logits_t_np = np.asarray(logits_t)
    for bb in range(B):
        d0_np = np.where(eye, 0.0,
                         np.where(adj_np[bb] > 0, 1.0, np.inf)).astype(np.float32)
        expected = _reference(d0_np, logits_t_np[bb])
        np.testing.assert_allclose(np.asarray(out[bb]), expected, rtol=1e-5, atol=1e-5)

    print("KERNEL_OK")
</pallas_src>

<mosaic_0001>
module attributes {stable_mosaic.version = 11 : i64} {
  func.func @distmask_kernel(%arg0: i32, %arg1: memref<1x16x128xf32, #tpu.memory_space<vmem>>, %arg2: memref<1x2x128xf32, #tpu.memory_space<vmem>>, %arg3: memref<1x16x128xf32, #tpu.memory_space<vmem>>) attributes {dimension_semantics = [#tpu.dimension_semantics<parallel>], iteration_bounds = array<i64: 2>, scalar_prefetch = 0 : i64, scratch_operands = 0 : i64, tpu.core_type = #tpu.core_type<tc>, window_params = [{transform_indices = @transform_0, window_bounds = array<i64: 1, 16, 128>}, {transform_indices = @transform_1, window_bounds = array<i64: 1, 2, 128>}, {transform_indices = @transform_2, window_bounds = array<i64: 1, 16, 128>}]} {
    %0 = tpu.iota {dimensions = array<i32: 1>} : vector<1x128xi32>
    %1 = tpu.iota {dimensions = array<i32: 0>} : vector<16x1xi32>
    %c0 = arith.constant 0 : index
    %c0_0 = arith.constant 0 : index
    %c0_1 = arith.constant 0 : index
    %2 = vector.load %arg1[%c0, %c0_0, %c0_1] : memref<1x16x128xf32, #tpu.memory_space<vmem>>, vector<1x16x128xf32>
    %3 = vector.shape_cast %2 : vector<1x16x128xf32> to vector<16x128xf32>
    %c0_i32 = arith.constant 0 : i32
    %4 = vector.broadcast %c0_i32 : i32 to vector<1x128xi32>
    %5 = arith.cmpi eq, %0, %4 : vector<1x128xi32>
    %cst = arith.constant 1.000000e+09 : f32
    %6 = vector.shape_cast %5 : vector<1x128xi1> to vector<1x128xi1>
    %7 = vector.broadcast %6 : vector<1x128xi1> to vector<16x128xi1>
    %8 = vector.broadcast %cst : f32 to vector<16x128xf32>
    %9 = arith.select %7, %3, %8 : vector<16x128xi1>, vector<16x128xf32>
    %cst_2 = arith.constant dense<0x7F800000> : vector<16xf32>
    %10 = vector.multi_reduction <minimumf>, %9, %cst_2 [1] : vector<16x128xf32> to vector<16xf32>
    %11 = vector.shape_cast %10 : vector<16xf32> to vector<16x1xf32>
    %12 = vector.broadcast %c0_i32 : i32 to vector<16x1xi32>
    %13 = arith.cmpi eq, %1, %12 : vector<16x1xi32>
    %cst_3 = arith.constant 1.000000e+09 : f32
    %14 = vector.shape_cast %13 : vector<16x1xi1> to vector<16x1xi1>
    %15 = vector.broadcast %14 : vector<16x1xi1> to vector<16x128xi1>
    %16 = vector.broadcast %cst_3 : f32 to vector<16x128xf32>
    %17 = arith.select %15, %3, %16 : vector<16x128xi1>, vector<16x128xf32>
    %cst_4 = arith.constant dense<0x7F800000> : vector<128xf32>
    %18 = vector.multi_reduction <minimumf>, %17, %cst_4 [0] : vector<16x128xf32> to vector<128xf32>
    %19 = vector.shape_cast %18 : vector<128xf32> to vector<1x128xf32>
    %20 = vector.broadcast %11 : vector<16x1xf32> to vector<16x128xf32>
    %21 = vector.broadcast %19 : vector<1x128xf32> to vector<16x128xf32>
    %22 = arith.addf %20, %21 : vector<16x128xf32>
    %23 = arith.minimumf %3, %22 : vector<16x128xf32>
    %c1_i32 = arith.constant 1 : i32
    %24 = vector.broadcast %c1_i32 : i32 to vector<1x128xi32>
    %25 = arith.cmpi eq, %0, %24 : vector<1x128xi32>
    %cst_5 = arith.constant 1.000000e+09 : f32
    %26 = vector.shape_cast %25 : vector<1x128xi1> to vector<1x128xi1>
    %27 = vector.broadcast %26 : vector<1x128xi1> to vector<16x128xi1>
    %28 = vector.broadcast %cst_5 : f32 to vector<16x128xf32>
    %29 = arith.select %27, %23, %28 : vector<16x128xi1>, vector<16x128xf32>
    %cst_6 = arith.constant dense<0x7F800000> : vector<16xf32>
    %30 = vector.multi_reduction <minimumf>, %29, %cst_6 [1] : vector<16x128xf32> to vector<16xf32>
    %31 = vector.shape_cast %30 : vector<16xf32> to vector<16x1xf32>
    %32 = vector.broadcast %c1_i32 : i32 to vector<16x1xi32>
    %33 = arith.cmpi eq, %1, %32 : vector<16x1xi32>
    %cst_7 = arith.constant 1.000000e+09 : f32
    %34 = vector.shape_cast %33 : vector<16x1xi1> to vector<16x1xi1>
    %35 = vector.broadcast %34 : vector<16x1xi1> to vector<16x128xi1>
    %36 = vector.broadcast %cst_7 : f32 to vector<16x128xf32>
    %37 = arith.select %35, %23, %36 : vector<16x128xi1>, vector<16x128xf32>
    %cst_8 = arith.constant dense<0x7F800000> : vector<128xf32>
    %38 = vector.multi_reduction <minimumf>, %37, %cst_8 [0] : vector<16x128xf32> to vector<128xf32>
    %39 = vector.shape_cast %38 : vector<128xf32> to vector<1x128xf32>
    %40 = vector.broadcast %31 : vector<16x1xf32> to vector<16x128xf32>
    %41 = vector.broadcast %39 : vector<1x128xf32> to vector<16x128xf32>
    %42 = arith.addf %40, %41 : vector<16x128xf32>
    %43 = arith.minimumf %23, %42 : vector<16x128xf32>
    %c2_i32 = arith.constant 2 : i32
    %44 = vector.broadcast %c2_i32 : i32 to vector<1x128xi32>
    %45 = arith.cmpi eq, %0, %44 : vector<1x128xi32>
    %cst_9 = arith.constant 1.000000e+09 : f32
    %46 = vector.shape_cast %45 : vector<1x128xi1> to vector<1x128xi1>
    %47 = vector.broadcast %46 : vector<1x128xi1> to vector<16x128xi1>
    %48 = vector.broadcast %cst_9 : f32 to vector<16x128xf32>
    %49 = arith.select %47, %43, %48 : vector<16x128xi1>, vector<16x128xf32>
    %cst_10 = arith.constant dense<0x7F800000> : vector<16xf32>
    %50 = vector.multi_reduction <minimumf>, %49, %cst_10 [1] : vector<16x128xf32> to vector<16xf32>
    %51 = vector.shape_cast %50 : vector<16xf32> to vector<16x1xf32>
    %52 = vector.broadcast %c2_i32 : i32 to vector<16x1xi32>
    %53 = arith.cmpi eq, %1, %52 : vector<16x1xi32>
    %cst_11 = arith.constant 1.000000e+09 : f32
    %54 = vector.shape_cast %53 : vector<16x1xi1> to vector<16x1xi1>
    %55 = vector.broadcast %54 : vector<16x1xi1> to vector<16x128xi1>
    %56 = vector.broadcast %cst_11 : f32 to vector<16x128xf32>
    %57 = arith.select %55, %43, %56 : vector<16x128xi1>, vector<16x128xf32>
    %cst_12 = arith.constant dense<0x7F800000> : vector<128xf32>
    %58 = vector.multi_reduction <minimumf>, %57, %cst_12 [0] : vector<16x128xf32> to vector<128xf32>
    %59 = vector.shape_cast %58 : vector<128xf32> to vector<1x128xf32>
    %60 = vector.broadcast %51 : vector<16x1xf32> to vector<16x128xf32>
    %61 = vector.broadcast %59 : vector<1x128xf32> to vector<16x128xf32>
    %62 = arith.addf %60, %61 : vector<16x128xf32>
    %63 = arith.minimumf %43, %62 : vector<16x128xf32>
    %c3_i32 = arith.constant 3 : i32
    %64 = vector.broadcast %c3_i32 : i32 to vector<1x128xi32>
    %65 = arith.cmpi eq, %0, %64 : vector<1x128xi32>
    %cst_13 = arith.constant 1.000000e+09 : f32
    %66 = vector.shape_cast %65 : vector<1x128xi1> to vector<1x128xi1>
    %67 = vector.broadcast %66 : vector<1x128xi1> to vector<16x128xi1>
    %68 = vector.broadcast %cst_13 : f32 to vector<16x128xf32>
    %69 = arith.select %67, %63, %68 : vector<16x128xi1>, vector<16x128xf32>
    %cst_14 = arith.constant dense<0x7F800000> : vector<16xf32>
    %70 = vector.multi_reduction <minimumf>, %69, %cst_14 [1] : vector<16x128xf32> to vector<16xf32>
    %71 = vector.shape_cast %70 : vector<16xf32> to vector<16x1xf32>
    %72 = vector.broadcast %c3_i32 : i32 to vector<16x1xi32>
    %73 = arith.cmpi eq, %1, %72 : vector<16x1xi32>
    %cst_15 = arith.constant 1.000000e+09 : f32
    %74 = vector.shape_cast %73 : vector<16x1xi1> to vector<16x1xi1>
    %75 = vector.broadcast %74 : vector<16x1xi1> to vector<16x128xi1>
    %76 = vector.broadcast %cst_15 : f32 to vector<16x128xf32>
    %77 = arith.select %75, %63, %76 : vector<16x128xi1>, vector<16x128xf32>
    %cst_16 = arith.constant dense<0x7F800000> : vector<128xf32>
    %78 = vector.multi_reduction <minimumf>, %77, %cst_16 [0] : vector<16x128xf32> to vector<128xf32>
    %79 = vector.shape_cast %78 : vector<128xf32> to vector<1x128xf32>
    %80 = vector.broadcast %71 : vector<16x1xf32> to vector<16x128xf32>
    %81 = vector.broadcast %79 : vector<1x128xf32> to vector<16x128xf32>
    %82 = arith.addf %80, %81 : vector<16x128xf32>
    %83 = arith.minimumf %63, %82 : vector<16x128xf32>
    %c4_i32 = arith.constant 4 : i32
    %84 = vector.broadcast %c4_i32 : i32 to vector<1x128xi32>
    %85 = arith.cmpi eq, %0, %84 : vector<1x128xi32>
    %cst_17 = arith.constant 1.000000e+09 : f32
    %86 = vector.shape_cast %85 : vector<1x128xi1> to vector<1x128xi1>
    %87 = vector.broadcast %86 : vector<1x128xi1> to vector<16x128xi1>
    %88 = vector.broadcast %cst_17 : f32 to vector<16x128xf32>
    %89 = arith.select %87, %83, %88 : vector<16x128xi1>, vector<16x128xf32>
    %cst_18 = arith.constant dense<0x7F800000> : vector<16xf32>
    %90 = vector.multi_reduction <minimumf>, %89, %cst_18 [1] : vector<16x128xf32> to vector<16xf32>
    %91 = vector.shape_cast %90 : vector<16xf32> to vector<16x1xf32>
    %92 = vector.broadcast %c4_i32 : i32 to vector<16x1xi32>
    %93 = arith.cmpi eq, %1, %92 : vector<16x1xi32>
    %cst_19 = arith.constant 1.000000e+09 : f32
    %94 = vector.shape_cast %93 : vector<16x1xi1> to vector<16x1xi1>
    %95 = vector.broadcast %94 : vector<16x1xi1> to vector<16x128xi1>
    %96 = vector.broadcast %cst_19 : f32 to vector<16x128xf32>
    %97 = arith.select %95, %83, %96 : vector<16x128xi1>, vector<16x128xf32>
    %cst_20 = arith.constant dense<0x7F800000> : vector<128xf32>
    %98 = vector.multi_reduction <minimumf>, %97, %cst_20 [0] : vector<16x128xf32> to vector<128xf32>
    %99 = vector.shape_cast %98 : vector<128xf32> to vector<1x128xf32>
    %100 = vector.broadcast %91 : vector<16x1xf32> to vector<16x128xf32>
    %101 = vector.broadcast %99 : vector<1x128xf32> to vector<16x128xf32>
    %102 = arith.addf %100, %101 : vector<16x128xf32>
    %103 = arith.minimumf %83, %102 : vector<16x128xf32>
    %c5_i32 = arith.constant 5 : i32
    %104 = vector.broadcast %c5_i32 : i32 to vector<1x128xi32>
    %105 = arith.cmpi eq, %0, %104 : vector<1x128xi32>
    %cst_21 = arith.constant 1.000000e+09 : f32
    %106 = vector.shape_cast %105 : vector<1x128xi1> to vector<1x128xi1>
    %107 = vector.broadcast %106 : vector<1x128xi1> to vector<16x128xi1>
    %108 = vector.broadcast %cst_21 : f32 to vector<16x128xf32>
    %109 = arith.select %107, %103, %108 : vector<16x128xi1>, vector<16x128xf32>
    %cst_22 = arith.constant dense<0x7F800000> : vector<16xf32>
    %110 = vector.multi_reduction <minimumf>, %109, %cst_22 [1] : vector<16x128xf32> to vector<16xf32>
    %111 = vector.shape_cast %110 : vector<16xf32> to vector<16x1xf32>
    %112 = vector.broadcast %c5_i32 : i32 to vector<16x1xi32>
    %113 = arith.cmpi eq, %1, %112 : vector<16x1xi32>
    %cst_23 = arith.constant 1.000000e+09 : f32
    %114 = vector.shape_cast %113 : vector<16x1xi1> to vector<16x1xi1>
    %115 = vector.broadcast %114 : vector<16x1xi1> to vector<16x128xi1>
    %116 = vector.broadcast %cst_23 : f32 to vector<16x128xf32>
    %117 = arith.select %115, %103, %116 : vector<16x128xi1>, vector<16x128xf32>
    %cst_24 = arith.constant dense<0x7F800000> : vector<128xf32>
    %118 = vector.multi_reduction <minimumf>, %117, %cst_24 [0] : vector<16x128xf32> to vector<128xf32>
    %119 = vector.shape_cast %118 : vector<128xf32> to vector<1x128xf32>
    %120 = vector.broadcast %111 : vector<16x1xf32> to vector<16x128xf32>
    %121 = vector.broadcast %119 : vector<1x128xf32> to vector<16x128xf32>
    %122 = arith.addf %120, %121 : vector<16x128xf32>
    %123 = arith.minimumf %103, %122 : vector<16x128xf32>
    %c6_i32 = arith.constant 6 : i32
    %124 = vector.broadcast %c6_i32 : i32 to vector<1x128xi32>
    %125 = arith.cmpi eq, %0, %124 : vector<1x128xi32>
    %cst_25 = arith.constant 1.000000e+09 : f32
    %126 = vector.shape_cast %125 : vector<1x128xi1> to vector<1x128xi1>
    %127 = vector.broadcast %126 : vector<1x128xi1> to vector<16x128xi1>
    %128 = vector.broadcast %cst_25 : f32 to vector<16x128xf32>
    %129 = arith.select %127, %123, %128 : vector<16x128xi1>, vector<16x128xf32>
    %cst_26 = arith.constant dense<0x7F800000> : vector<16xf32>
    %130 = vector.multi_reduction <minimumf>, %129, %cst_26 [1] : vector<16x128xf32> to vector<16xf32>
    %131 = vector.shape_cast %130 : vector<16xf32> to vector<16x1xf32>
    %132 = vector.broadcast %c6_i32 : i32 to vector<16x1xi32>
    %133 = arith.cmpi eq, %1, %132 : vector<16x1xi32>
    %cst_27 = arith.constant 1.000000e+09 : f32
    %134 = vector.shape_cast %133 : vector<16x1xi1> to vector<16x1xi1>
    %135 = vector.broadcast %134 : vector<16x1xi1> to vector<16x128xi1>
    %136 = vector.broadcast %cst_27 : f32 to vector<16x128xf32>
    %137 = arith.select %135, %123, %136 : vector<16x128xi1>, vector<16x128xf32>
    %cst_28 = arith.constant dense<0x7F800000> : vector<128xf32>
    %138 = vector.multi_reduction <minimumf>, %137, %cst_28 [0] : vector<16x128xf32> to vector<128xf32>
    %139 = vector.shape_cast %138 : vector<128xf32> to vector<1x128xf32>
    %140 = vector.broadcast %131 : vector<16x1xf32> to vector<16x128xf32>
    %141 = vector.broadcast %139 : vector<1x128xf32> to vector<16x128xf32>
    %142 = arith.addf %140, %141 : vector<16x128xf32>
    %143 = arith.minimumf %123, %142 : vector<16x128xf32>
    %c7_i32 = arith.constant 7 : i32
    %144 = vector.broadcast %c7_i32 : i32 to vector<1x128xi32>
    %145 = arith.cmpi eq, %0, %144 : vector<1x128xi32>
    %cst_29 = arith.constant 1.000000e+09 : f32
    %146 = vector.shape_cast %145 : vector<1x128xi1> to vector<1x128xi1>
    %147 = vector.broadcast %146 : vector<1x128xi1> to vector<16x128xi1>
    %148 = vector.broadcast %cst_29 : f32 to vector<16x128xf32>
    %149 = arith.select %147, %143, %148 : vector<16x128xi1>, vector<16x128xf32>
    %cst_30 = arith.constant dense<0x7F800000> : vector<16xf32>
    %150 = vector.multi_reduction <minimumf>, %149, %cst_30 [1] : vector<16x128xf32> to vector<16xf32>
    %151 = vector.shape_cast %150 : vector<16xf32> to vector<16x1xf32>
    %152 = vector.broadcast %c7_i32 : i32 to vector<16x1xi32>
    %153 = arith.cmpi eq, %1, %152 : vector<16x1xi32>
    %cst_31 = arith.constant 1.000000e+09 : f32
    %154 = vector.shape_cast %153 : vector<16x1xi1> to vector<16x1xi1>
    %155 = vector.broadcast %154 : vector<16x1xi1> to vector<16x128xi1>
    %156 = vector.broadcast %cst_31 : f32 to vector<16x128xf32>
    %157 = arith.select %155, %143, %156 : vector<16x128xi1>, vector<16x128xf32>
    %cst_32 = arith.constant dense<0x7F800000> : vector<128xf32>
    %158 = vector.multi_reduction <minimumf>, %157, %cst_32 [0] : vector<16x128xf32> to vector<128xf32>
    %159 = vector.shape_cast %158 : vector<128xf32> to vector<1x128xf32>
    %160 = vector.broadcast %151 : vector<16x1xf32> to vector<16x128xf32>
    %161 = vector.broadcast %159 : vector<1x128xf32> to vector<16x128xf32>
    %162 = arith.addf %160, %161 : vector<16x128xf32>
    %163 = arith.minimumf %143, %162 : vector<16x128xf32>
    %c8_i32 = arith.constant 8 : i32
    %164 = vector.broadcast %c8_i32 : i32 to vector<1x128xi32>
    %165 = arith.cmpi eq, %0, %164 : vector<1x128xi32>
    %cst_33 = arith.constant 1.000000e+09 : f32
    %166 = vector.shape_cast %165 : vector<1x128xi1> to vector<1x128xi1>
    %167 = vector.broadcast %166 : vector<1x128xi1> to vector<16x128xi1>
    %168 = vector.broadcast %cst_33 : f32 to vector<16x128xf32>
    %169 = arith.select %167, %163, %168 : vector<16x128xi1>, vector<16x128xf32>
    %cst_34 = arith.constant dense<0x7F800000> : vector<16xf32>
    %170 = vector.multi_reduction <minimumf>, %169, %cst_34 [1] : vector<16x128xf32> to vector<16xf32>
    %171 = vector.shape_cast %170 : vector<16xf32> to vector<16x1xf32>
    %172 = vector.broadcast %c8_i32 : i32 to vector<16x1xi32>
    %173 = arith.cmpi eq, %1, %172 : vector<16x1xi32>
    %cst_35 = arith.constant 1.000000e+09 : f32
    %174 = vector.shape_cast %173 : vector<16x1xi1> to vector<16x1xi1>
    %175 = vector.broadcast %174 : vector<16x1xi1> to vector<16x128xi1>
    %176 = vector.broadcast %cst_35 : f32 to vector<16x128xf32>
    %177 = arith.select %175, %163, %176 : vector<16x128xi1>, vector<16x128xf32>
    %cst_36 = arith.constant dense<0x7F800000> : vector<128xf32>
    %178 = vector.multi_reduction <minimumf>, %177, %cst_36 [0] : vector<16x128xf32> to vector<128xf32>
    %179 = vector.shape_cast %178 : vector<128xf32> to vector<1x128xf32>
    %180 = vector.broadcast %171 : vector<16x1xf32> to vector<16x128xf32>
    %181 = vector.broadcast %179 : vector<1x128xf32> to vector<16x128xf32>
    %182 = arith.addf %180, %181 : vector<16x128xf32>
    %183 = arith.minimumf %163, %182 : vector<16x128xf32>
    %c9_i32 = arith.constant 9 : i32
    %184 = vector.broadcast %c9_i32 : i32 to vector<1x128xi32>
    %185 = arith.cmpi eq, %0, %184 : vector<1x128xi32>
    %cst_37 = arith.constant 1.000000e+09 : f32
    %186 = vector.shape_cast %185 : vector<1x128xi1> to vector<1x128xi1>
    %187 = vector.broadcast %186 : vector<1x128xi1> to vector<16x128xi1>
    %188 = vector.broadcast %cst_37 : f32 to vector<16x128xf32>
    %189 = arith.select %187, %183, %188 : vector<16x128xi1>, vector<16x128xf32>
    %cst_38 = arith.constant dense<0x7F800000> : vector<16xf32>
    %190 = vector.multi_reduction <minimumf>, %189, %cst_38 [1] : vector<16x128xf32> to vector<16xf32>
    %191 = vector.shape_cast %190 : vector<16xf32> to vector<16x1xf32>
    %192 = vector.broadcast %c9_i32 : i32 to vector<16x1xi32>
    %193 = arith.cmpi eq, %1, %192 : vector<16x1xi32>
    %cst_39 = arith.constant 1.000000e+09 : f32
    %194 = vector.shape_cast %193 : vector<16x1xi1> to vector<16x1xi1>
    %195 = vector.broadcast %194 : vector<16x1xi1> to vector<16x128xi1>
    %196 = vector.broadcast %cst_39 : f32 to vector<16x128xf32>
    %197 = arith.select %195, %183, %196 : vector<16x128xi1>, vector<16x128xf32>
    %cst_40 = arith.constant dense<0x7F800000> : vector<128xf32>
    %198 = vector.multi_reduction <minimumf>, %197, %cst_40 [0] : vector<16x128xf32> to vector<128xf32>
    %199 = vector.shape_cast %198 : vector<128xf32> to vector<1x128xf32>
    %200 = vector.broadcast %191 : vector<16x1xf32> to vector<16x128xf32>
    %201 = vector.broadcast %199 : vector<1x128xf32> to vector<16x128xf32>
    %202 = arith.addf %200, %201 : vector<16x128xf32>
    %203 = arith.minimumf %183, %202 : vector<16x128xf32>
    %c10_i32 = arith.constant 10 : i32
    %204 = vector.broadcast %c10_i32 : i32 to vector<1x128xi32>
    %205 = arith.cmpi eq, %0, %204 : vector<1x128xi32>
    %cst_41 = arith.constant 1.000000e+09 : f32
    %206 = vector.shape_cast %205 : vector<1x128xi1> to vector<1x128xi1>
    %207 = vector.broadcast %206 : vector<1x128xi1> to vector<16x128xi1>
    %208 = vector.broadcast %cst_41 : f32 to vector<16x128xf32>
    %209 = arith.select %207, %203, %208 : vector<16x128xi1>, vector<16x128xf32>
    %cst_42 = arith.constant dense<0x7F800000> : vector<16xf32>
    %210 = vector.multi_reduction <minimumf>, %209, %cst_42 [1] : vector<16x128xf32> to vector<16xf32>
    %211 = vector.shape_cast %210 : vector<16xf32> to vector<16x1xf32>
    %212 = vector.broadcast %c10_i32 : i32 to vector<16x1xi32>
    %213 = arith.cmpi eq, %1, %212 : vector<16x1xi32>
    %cst_43 = arith.constant 1.000000e+09 : f32
    %214 = vector.shape_cast %213 : vector<16x1xi1> to vector<16x1xi1>
    %215 = vector.broadcast %214 : vector<16x1xi1> to vector<16x128xi1>
    %216 = vector.broadcast %cst_43 : f32 to vector<16x128xf32>
    %217 = arith.select %215, %203, %216 : vector<16x128xi1>, vector<16x128xf32>
    %cst_44 = arith.constant dense<0x7F800000> : vector<128xf32>
    %218 = vector.multi_reduction <minimumf>, %217, %cst_44 [0] : vector<16x128xf32> to vector<128xf32>
    %219 = vector.shape_cast %218 : vector<128xf32> to vector<1x128xf32>
    %220 = vector.broadcast %211 : vector<16x1xf32> to vector<16x128xf32>
    %221 = vector.broadcast %219 : vector<1x128xf32> to vector<16x128xf32>
    %222 = arith.addf %220, %221 : vector<16x128xf32>
    %223 = arith.minimumf %203, %222 : vector<16x128xf32>
    %c11_i32 = arith.constant 11 : i32
    %224 = vector.broadcast %c11_i32 : i32 to vector<1x128xi32>
    %225 = arith.cmpi eq, %0, %224 : vector<1x128xi32>
    %cst_45 = arith.constant 1.000000e+09 : f32
    %226 = vector.shape_cast %225 : vector<1x128xi1> to vector<1x128xi1>
    %227 = vector.broadcast %226 : vector<1x128xi1> to vector<16x128xi1>
    %228 = vector.broadcast %cst_45 : f32 to vector<16x128xf32>
    %229 = arith.select %227, %223, %228 : vector<16x128xi1>, vector<16x128xf32>
    %cst_46 = arith.constant dense<0x7F800000> : vector<16xf32>
    %230 = vector.multi_reduction <minimumf>, %229, %cst_46 [1] : vector<16x128xf32> to vector<16xf32>
    %231 = vector.shape_cast %230 : vector<16xf32> to vector<16x1xf32>
    %232 = vector.broadcast %c11_i32 : i32 to vector<16x1xi32>
    %233 = arith.cmpi eq, %1, %232 : vector<16x1xi32>
    %cst_47 = arith.constant 1.000000e+09 : f32
    %234 = vector.shape_cast %233 : vector<16x1xi1> to vector<16x1xi1>
    %235 = vector.broadcast %234 : vector<16x1xi1> to vector<16x128xi1>
    %236 = vector.broadcast %cst_47 : f32 to vector<16x128xf32>
    %237 = arith.select %235, %223, %236 : vector<16x128xi1>, vector<16x128xf32>
    %cst_48 = arith.constant dense<0x7F800000> : vector<128xf32>
    %238 = vector.multi_reduction <minimumf>, %237, %cst_48 [0] : vector<16x128xf32> to vector<128xf32>
    %239 = vector.shape_cast %238 : vector<128xf32> to vector<1x128xf32>
    %240 = vector.broadcast %231 : vector<16x1xf32> to vector<16x128xf32>
    %241 = vector.broadcast %239 : vector<1x128xf32> to vector<16x128xf32>
    %242 = arith.addf %240, %241 : vector<16x128xf32>
    %243 = arith.minimumf %223, %242 : vector<16x128xf32>
    %c12_i32 = arith.constant 12 : i32
    %244 = vector.broadcast %c12_i32 : i32 to vector<1x128xi32>
    %245 = arith.cmpi eq, %0, %244 : vector<1x128xi32>
    %cst_49 = arith.constant 1.000000e+09 : f32
    %246 = vector.shape_cast %245 : vector<1x128xi1> to vector<1x128xi1>
    %247 = vector.broadcast %246 : vector<1x128xi1> to vector<16x128xi1>
    %248 = vector.broadcast %cst_49 : f32 to vector<16x128xf32>
    %249 = arith.select %247, %243, %248 : vector<16x128xi1>, vector<16x128xf32>
    %cst_50 = arith.constant dense<0x7F800000> : vector<16xf32>
    %250 = vector.multi_reduction <minimumf>, %249, %cst_50 [1] : vector<16x128xf32> to vector<16xf32>
    %251 = vector.shape_cast %250 : vector<16xf32> to vector<16x1xf32>
    %252 = vector.broadcast %c12_i32 : i32 to vector<16x1xi32>
    %253 = arith.cmpi eq, %1, %252 : vector<16x1xi32>
    %cst_51 = arith.constant 1.000000e+09 : f32
    %254 = vector.shape_cast %253 : vector<16x1xi1> to vector<16x1xi1>
    %255 = vector.broadcast %254 : vector<16x1xi1> to vector<16x128xi1>
    %256 = vector.broadcast %cst_51 : f32 to vector<16x128xf32>
    %257 = arith.select %255, %243, %256 : vector<16x128xi1>, vector<16x128xf32>
    %cst_52 = arith.constant dense<0x7F800000> : vector<128xf32>
    %258 = vector.multi_reduction <minimumf>, %257, %cst_52 [0] : vector<16x128xf32> to vector<128xf32>
    %259 = vector.shape_cast %258 : vector<128xf32> to vector<1x128xf32>
    %260 = vector.broadcast %251 : vector<16x1xf32> to vector<16x128xf32>
    %261 = vector.broadcast %259 : vector<1x128xf32> to vector<16x128xf32>
    %262 = arith.addf %260, %261 : vector<16x128xf32>
    %263 = arith.minimumf %243, %262 : vector<16x128xf32>
    %c13_i32 = arith.constant 13 : i32
    %264 = vector.broadcast %c13_i32 : i32 to vector<1x128xi32>
    %265 = arith.cmpi eq, %0, %264 : vector<1x128xi32>
    %cst_53 = arith.constant 1.000000e+09 : f32
    %266 = vector.shape_cast %265 : vector<1x128xi1> to vector<1x128xi1>
    %267 = vector.broadcast %266 : vector<1x128xi1> to vector<16x128xi1>
    %268 = vector.broadcast %cst_53 : f32 to vector<16x128xf32>
    %269 = arith.select %267, %263, %268 : vector<16x128xi1>, vector<16x128xf32>
    %cst_54 = arith.constant dense<0x7F800000> : vector<16xf32>
    %270 = vector.multi_reduction <minimumf>, %269, %cst_54 [1] : vector<16x128xf32> to vector<16xf32>
    %271 = vector.shape_cast %270 : vector<16xf32> to vector<16x1xf32>
    %272 = vector.broadcast %c13_i32 : i32 to vector<16x1xi32>
    %273 = arith.cmpi eq, %1, %272 : vector<16x1xi32>
    %cst_55 = arith.constant 1.000000e+09 : f32
    %274 = vector.shape_cast %273 : vector<16x1xi1> to vector<16x1xi1>
    %275 = vector.broadcast %274 : vector<16x1xi1> to vector<16x128xi1>
    %276 = vector.broadcast %cst_55 : f32 to vector<16x128xf32>
    %277 = arith.select %275, %263, %276 : vector<16x128xi1>, vector<16x128xf32>
    %cst_56 = arith.constant dense<0x7F800000> : vector<128xf32>
    %278 = vector.multi_reduction <minimumf>, %277, %cst_56 [0] : vector<16x128xf32> to vector<128xf32>
    %279 = vector.shape_cast %278 : vector<128xf32> to vector<1x128xf32>
    %280 = vector.broadcast %271 : vector<16x1xf32> to vector<16x128xf32>
    %281 = vector.broadcast %279 : vector<1x128xf32> to vector<16x128xf32>
    %282 = arith.addf %280, %281 : vector<16x128xf32>
    %283 = arith.minimumf %263, %282 : vector<16x128xf32>
    %c14_i32 = arith.constant 14 : i32
    %284 = vector.broadcast %c14_i32 : i32 to vector<1x128xi32>
    %285 = arith.cmpi eq, %0, %284 : vector<1x128xi32>
    %cst_57 = arith.constant 1.000000e+09 : f32
    %286 = vector.shape_cast %285 : vector<1x128xi1> to vector<1x128xi1>
    %287 = vector.broadcast %286 : vector<1x128xi1> to vector<16x128xi1>
    %288 = vector.broadcast %cst_57 : f32 to vector<16x128xf32>
    %289 = arith.select %287, %283, %288 : vector<16x128xi1>, vector<16x128xf32>
    %cst_58 = arith.constant dense<0x7F800000> : vector<16xf32>
    %290 = vector.multi_reduction <minimumf>, %289, %cst_58 [1] : vector<16x128xf32> to vector<16xf32>
    %291 = vector.shape_cast %290 : vector<16xf32> to vector<16x1xf32>
    %292 = vector.broadcast %c14_i32 : i32 to vector<16x1xi32>
    %293 = arith.cmpi eq, %1, %292 : vector<16x1xi32>
    %cst_59 = arith.constant 1.000000e+09 : f32
    %294 = vector.shape_cast %293 : vector<16x1xi1> to vector<16x1xi1>
    %295 = vector.broadcast %294 : vector<16x1xi1> to vector<16x128xi1>
    %296 = vector.broadcast %cst_59 : f32 to vector<16x128xf32>
    %297 = arith.select %295, %283, %296 : vector<16x128xi1>, vector<16x128xf32>
    %cst_60 = arith.constant dense<0x7F800000> : vector<128xf32>
    %298 = vector.multi_reduction <minimumf>, %297, %cst_60 [0] : vector<16x128xf32> to vector<128xf32>
    %299 = vector.shape_cast %298 : vector<128xf32> to vector<1x128xf32>
    %300 = vector.broadcast %291 : vector<16x1xf32> to vector<16x128xf32>
    %301 = vector.broadcast %299 : vector<1x128xf32> to vector<16x128xf32>
    %302 = arith.addf %300, %301 : vector<16x128xf32>
    %303 = arith.minimumf %283, %302 : vector<16x128xf32>
    %c15_i32 = arith.constant 15 : i32
    %304 = vector.broadcast %c15_i32 : i32 to vector<1x128xi32>
    %305 = arith.cmpi eq, %0, %304 : vector<1x128xi32>
    %cst_61 = arith.constant 1.000000e+09 : f32
    %306 = vector.shape_cast %305 : vector<1x128xi1> to vector<1x128xi1>
    %307 = vector.broadcast %306 : vector<1x128xi1> to vector<16x128xi1>
    %308 = vector.broadcast %cst_61 : f32 to vector<16x128xf32>
    %309 = arith.select %307, %303, %308 : vector<16x128xi1>, vector<16x128xf32>
    %cst_62 = arith.constant dense<0x7F800000> : vector<16xf32>
    %310 = vector.multi_reduction <minimumf>, %309, %cst_62 [1] : vector<16x128xf32> to vector<16xf32>
    %311 = vector.shape_cast %310 : vector<16xf32> to vector<16x1xf32>
    %312 = vector.broadcast %c15_i32 : i32 to vector<16x1xi32>
    %313 = arith.cmpi eq, %1, %312 : vector<16x1xi32>
    %cst_63 = arith.constant 1.000000e+09 : f32
    %314 = vector.shape_cast %313 : vector<16x1xi1> to vector<16x1xi1>
    %315 = vector.broadcast %314 : vector<16x1xi1> to vector<16x128xi1>
    %316 = vector.broadcast %cst_63 : f32 to vector<16x128xf32>
    %317 = arith.select %315, %303, %316 : vector<16x128xi1>, vector<16x128xf32>
    %cst_64 = arith.constant dense<0x7F800000> : vector<128xf32>
    %318 = vector.multi_reduction <minimumf>, %317, %cst_64 [0] : vector<16x128xf32> to vector<128xf32>
    %319 = vector.shape_cast %318 : vector<128xf32> to vector<1x128xf32>
    %320 = vector.broadcast %311 : vector<16x1xf32> to vector<16x128xf32>
    %321 = vector.broadcast %319 : vector<1x128xf32> to vector<16x128xf32>
    %322 = arith.addf %320, %321 : vector<16x128xf32>
    %323 = arith.minimumf %303, %322 : vector<16x128xf32>
    %c16_i32 = arith.constant 16 : i32
    %c0_65 = arith.constant 0 : index
    %c0_66 = arith.constant 0 : index
    %c0_67 = arith.constant 0 : index
    %324 = vector.load %arg2[%c0_65, %c0_66, %c0_67] : memref<1x2x128xf32, #tpu.memory_space<vmem>>, vector<1x1x128xf32>
    %325 = vector.shape_cast %324 : vector<1x1x128xf32> to vector<1x128xf32>
    %c0_68 = arith.constant 0 : index
    %c1 = arith.constant 1 : index
    %c0_69 = arith.constant 0 : index
    %326 = vector.load %arg2[%c0_68, %c1, %c0_69] : memref<1x2x128xf32, #tpu.memory_space<vmem>>, vector<1x1x128xf32>
    %327 = vector.shape_cast %326 : vector<1x1x128xf32> to vector<1x128xf32>
    %328 = arith.cmpf oge, %325, %327 : vector<1x128xf32>
    %329 = arith.extui %328 : vector<1x128xi1> to vector<1x128xi32>
    %330 = arith.sitofp %329 : vector<1x128xi32> to vector<1x128xf32>
    %cst_70 = arith.constant 5.000000e+08 : f32
    %331 = vector.broadcast %cst_70 : f32 to vector<16x128xf32>
    %332 = arith.cmpf oge, %323, %331 : vector<16x128xf32>
    %cst_71 = arith.constant 0x7F800000 : f32
    %333 = vector.broadcast %cst_71 : f32 to vector<16x128xf32>
    %334 = arith.select %332, %333, %323 : vector<16x128xi1>, vector<16x128xf32>
    %335 = vector.broadcast %330 : vector<1x128xf32> to vector<16x128xf32>
    %336 = arith.mulf %334, %335 : vector<16x128xf32>
    %c0_72 = arith.constant 0 : index
    %c0_73 = arith.constant 0 : index
    %c0_74 = arith.constant 0 : index
    %337 = vector.load %arg3[%c0_72, %c0_73, %c0_74] : memref<1x16x128xf32, #tpu.memory_space<vmem>>, vector<1x16x128xf32>
    %338 = vector.shape_cast %337 : vector<1x16x128xf32> to vector<16x128xf32>
    %339 = vector.shape_cast %336 : vector<16x128xf32> to vector<1x16x128xf32>
    tpu.vector_store %arg3[%c0_72, %c0_73, %c0_74], %339 {strides = array<i32>} : memref<1x16x128xf32, #tpu.memory_space<vmem>>, vector<1x16x128xf32>,
    return
  }
  func.func @transform_0(%arg0: i32) -> (i32, i32, i32) {
    %c0_i32 = arith.constant 0 : i32
    %c0_i32_0 = arith.constant 0 : i32
    %c0_i32_1 = arith.constant 0 : i32
    return %arg0, %c0_i32, %c0_i32_0 : i32, i32, i32
  }
  func.func @transform_1(%arg0: i32) -> (i32, i32, i32) {
    %c0_i32 = arith.constant 0 : i32
    %c0_i32_0 = arith.constant 0 : i32
    %c0_i32_1 = arith.constant 0 : i32
    return %arg0, %c0_i32, %c0_i32_0 : i32, i32, i32
  }
  func.func @transform_2(%arg0: i32) -> (i32, i32, i32) {
    %c0_i32 = arith.constant 0 : i32
    %c0_i32_0 = arith.constant 0 : i32
    %c0_i32_1 = arith.constant 0 : i32
    return %arg0, %c0_i32, %c0_i32_0 : i32, i32, i32
  }
}

</mosaic_0001>

<llo_original>
// kernel: _distmask_padded.1
$region0: #{_distmask_padded.1}
  #allocation0 [shape = 'u32[]', space=smem, size = 0x4, offset = 0x4, fixed_abs, tag = 'smem constant byte address 0x4 - core index']
  #allocation1 [shape = 'u32[144,128]{1,0:T(1,128)}', space=vmem, size = 0x12000, scoped, tag = 'internal scratch']
  %s0 = inlined_call_operand.hbm [shape: f32[2,16,128], index: 0, kind: input, shape index: {}]
  %s1 = inlined_call_operand.hbm [shape: f32[2,2,128], index: 1, kind: input, shape index: {}]
  %s2 = inlined_call_operand.hbm [shape: f32[2,16,128], index: 2, kind: output, shape index: {}]
  %s3 = sld [smem:[#allocation0]]
  $region49: #{_distmask_padded.1} parent=0
    _
  %s5 = ssub.s32 1, %s3
  %s6 = scalar_select 0, %s5, %s3
  $region1: #{_distmask_padded.1} parent=0
    #allocation2 [shape = 'u8[16384]{0}', space=vmem, size = 0x4000, scoped, tag = 'input window, operand 0']
    #allocation3 [shape = 's32[2]{0}', space=sflag, size = 0x8, scoped, tag = 'scoped memory for _distmask_padded.1']
    #allocation4 [shape = 's32[2]{0}', space=sflag, size = 0x8, scoped, tag = 'scoped memory for _distmask_padded.1']
    #allocation5 [shape = 'u8[2048]{0}', space=vmem, size = 0x800, scoped, tag = 'input window, operand 1']
    #allocation6 [shape = 's32[2]{0}', space=sflag, size = 0x8, scoped, tag = 'scoped memory for _distmask_padded.1']
    #allocation7 [shape = 'u8[16384]{0}', space=vmem, size = 0x4000, scoped, tag = 'output window, operand 0']
    %7 = vsyncpa [#allocation3], 0
    %s8 = scalar_lea.sflag [#allocation3], 1
    %9 = vsyncpa %s8, 0
    %10 = vsyncpa [#allocation6], 0
    %s11 = scalar_lea.sflag [#allocation6], 1
    %12 = vsyncpa %s11, 0
    %13 = vsyncpa [#allocation4], 0
    %s14 = scalar_lea.sflag [#allocation4], 1
    %15 = vsyncpa %s14, 0
    loop: start=0, step=1, limit=4
    $region2: #{_distmask_padded.1} parent=1 // loop_pre_header
      _
    $region3: #{_distmask_padded.1} parent=1 // loop_header
      %s17 = sphi 0, %s21
      %p18 = scmp.ge.s32.totalorder %s17, 4
      %s27 = sphi 0, %s29
      %s30 = sphi 0, %s27
      %s31 = sphi 0, %s30
      %s47 = sphi 0, %s31
      %s53 = sphi 0, %s55
      %s56 = sphi 0, %s53
      %s57 = sphi 0, %s56
      %s73 = sphi 0, %s57
      %s79 = sphi 0, %s81
      %s82 = sphi 0, %s79
      %s83 = sphi 0, %s82
      %s99 = sphi 0, %s83
    $region4: #{_distmask_padded.1} parent=1 // loop_header_branch
      %20 = sbr.rel (%p18) target = $region8
    $region5: #{_distmask_padded.1} parent=1 // loop_body
      %s22 = ssub.s32 %s17, 1
      %s23 = ssub.s32 %s17, 2
      %s24 = sadd.s32 %s17, 1
      %s25 = ssub.s32 %s17, %s24
      %p26 = scmp.eq.s32.totalorder %s25, 0
      %s28 = sadd.s32 %s27, 1
      %s29 = scalar_select %p26, %s27, %s28
      %p32 = pneg %p26
      %p33 = scmp.eq.s32.totalorder %s17, 1
      %p34 = por %p32, %p33
      %p35 = scmp.ne.s32.totalorder %s27, %s30
      %p36 = scmp.eq.s32.totalorder %s17, 0
      %p37 = por %p35, %p36
      %p38 = scmp.ne.s32.totalorder %s27, %s30
      %p39 = scmp.eq.s32.totalorder %s22, 1
      %p40 = por %p38, %p39
      %p41 = scmp.ne.s32.totalorder %s30, %s31
      %p42 = scmp.eq.s32.totalorder %s22, 0
      %p43 = por %p41, %p42
      %p44 = scmp.ne.s32.totalorder %s30, %s31
      %p45 = scmp.eq.s32.totalorder %s23, 1
      %p46 = por %p44, %p45
      %p48 = scmp.ne.s32.totalorder %s31, %s47
      %p49 = scmp.eq.s32.totalorder %s23, 0
      %p50 = por %p48, %p49
      %s51 = ssub.s32 %s17, %s24
      %p52 = scmp.eq.s32.totalorder %s51, 0
      %s54 = sadd.s32 %s53, 1
      %s55 = scalar_select %p52, %s53, %s54
      %p58 = pneg %p52
      %p59 = scmp.eq.s32.totalorder %s17, 1
      %p60 = por %p58, %p59
      %p61 = scmp.ne.s32.totalorder %s53, %s56
      %p62 = scmp.eq.s32.totalorder %s17, 0
      %p63 = por %p61, %p62
      %p64 = scmp.ne.s32.totalorder %s53, %s56
      %p65 = scmp.eq.s32.totalorder %s22, 1
      %p66 = por %p64, %p65
      %p67 = scmp.ne.s32.totalorder %s56, %s57
      %p68 = scmp.eq.s32.totalorder %s22, 0
      %p69 = por %p67, %p68
      %p70 = scmp.ne.s32.totalorder %s56, %s57
      %p71 = scmp.eq.s32.totalorder %s23, 1
      %p72 = por %p70, %p71
      %p74 = scmp.ne.s32.totalorder %s57, %s73
      %p75 = scmp.eq.s32.totalorder %s23, 0
      %p76 = por %p74, %p75
      %s77 = ssub.s32 %s17, %s24
      %p78 = scmp.eq.s32.totalorder %s77, 0
      %s80 = sadd.s32 %s79, 1
      %s81 = scalar_select %p78, %s79, %s80
      %p84 = pneg %p78
      %p85 = scmp.eq.s32.totalorder %s17, 1
      %p86 = por %p84, %p85
      %p87 = scmp.ne.s32.totalorder %s79, %s82
      %p88 = scmp.eq.s32.totalorder %s17, 0
      %p89 = por %p87, %p88
      %p90 = scmp.ne.s32.totalorder %s79, %s82
      %p91 = scmp.eq.s32.totalorder %s22, 1
      %p92 = por %p90, %p91
      %p93 = scmp.ne.s32.totalorder %s82, %s83
      %p94 = scmp.eq.s32.totalorder %s22, 0
      %p95 = por %p93, %p94
      %p96 = scmp.ne.s32.totalorder %s82, %s83
      %p97 = scmp.eq.s32.totalorder %s23, 1
      %p98 = por %p96, %p97
      %p100 = scmp.ne.s32.totalorder %s83, %s99
      %p101 = scmp.eq.s32.totalorder %s23, 0
      %p102 = por %p100, %p101
      %p103 = scmp.le.s32.totalorder 1, %s17
      %p104 = scmp.lt.s32.totalorder %s17, 3
      %p105 = pnand %p103, %p104
      %p106 = pneg %p105
      // Predicated region
      $region9: #{_distmask_padded.1} parent=5 // pred_check
        _
      $region10: #{_distmask_padded.1} parent=5 // pred_check_branch
        %108 = sbr.rel (%p105) target = $region12
      $region11: #{_distmask_padded.1} parent=5 // pred_region
        %s109 = ssub.s32 %s17, 1
      $region12: #{_distmask_padded.1} parent=5 // pred_fallthru
        _
      %p110 = scmp.lt.s32.totalorder %s17, 2
      // Predicated region
      $region13: #{_distmask_padded.1} parent=5 // pred_check
        %p111 = pneg %p110
      $region14: #{_distmask_padded.1} parent=5 // pred_check_branch
        %113 = sbr.rel (%p111) target = $region16
      $region15: #{_distmask_padded.1} parent=5 // pred_region
        // Predicated region
        $region17: #{_distmask_padded.1} parent=15 // pred_check
          %p114 = pneg %p37
        $region18: #{_distmask_padded.1} parent=15 // pred_check_branch
          %116 = sbr.rel (%p114) target = $region20
        $region19: #{_distmask_padded.1} parent=15 // pred_region
          %s117 = sand.u32 %s27, 1
          %s118 = scalar_lea.sflag [#allocation3], %s117
          %s119 = sand.u32 %s27, 1
          %s120 = smul.addr %s119, 16
          %s121 = scalar_lea.vmem [#allocation2], %s120
          %s123 = ssub.s32 256, 256
          %124 = vsyncadd %s118, %s123
          %s125 = smul.addr %s17, 2
          %s126 = smul.addr %s125, 128
          %s127 = scalar_lea.hbm %s0, %s126
          %s128 = sshll.u32 %s121, 4
          %s129 = int_to_ptr.vmem [resolvable:$true] %s128
          %134 = dma.hbm_to_vmem [thread:$0]  %s127, 256, %s129, %s118, 128, 128, 8
        $region20: #{_distmask_padded.1} parent=15 // pred_fallthru
          _
        // Predicated region
        $region21: #{_distmask_padded.1} parent=15 // pred_check
          %p135 = pneg %p63
        $region22: #{_distmask_padded.1} parent=15 // pred_check_branch
          %137 = sbr.rel (%p135) target = $region24
        $region23: #{_distmask_padded.1} parent=15 // pred_region
          %s138 = sand.u32 %s53, 1
          %s139 = scalar_lea.sflag [#allocation6], %s138
          %s140 = sand.u32 %s53, 1
          %s141 = smul.addr %s140, 2
          %s142 = scalar_lea.vmem [#allocation5], %s141
          %s144 = ssub.s32 32, 32
          %145 = vsyncadd %s139, %s144
          %s146 = smul.addr %s17, 32
          %s147 = scalar_lea.hbm %s1, %s146
          %s149 = sshll.u32 %s142, 4
          %s150 = int_to_ptr.vmem [resolvable:$true] %s149
          %152 = dma.hbm_to_vmem [thread:$0]  %s147, 32, %s150, %s139
        $region24: #{_distmask_padded.1} parent=15 // pred_fallthru
          _
      $region16: #{_distmask_padded.1} parent=5 // pred_fallthru
        _
      %p153 = scmp.le.s32.totalorder 1, %s17
      %p154 = scmp.lt.s32.totalorder %s17, 3
      %p155 = pnand %p153, %p154
      %p156 = pneg %p155
      // Predicated region
      $region25: #{_distmask_padded.1} parent=5 // pred_check
        _
      $region26: #{_distmask_padded.1} parent=5 // pred_check_branch
        %158 = sbr.rel (%p155) target = $region28
      $region27: #{_distmask_padded.1} parent=5 // pred_region
        %s159 = ssub.s32 %s17, 1
        %s160 = sand.u32 %s30, 1
        %s161 = scalar_lea.sflag [#allocation3], %s160
        %s162 = sand.u32 %s30, 1
        %s163 = smul.addr %s162, 16
        %s164 = scalar_lea.vmem [#allocation2], %s163
        // Predicated region
        $region29: #{_distmask_padded.1} parent=27 // pred_check
          %p165 = pneg %p43
        $region30: #{_distmask_padded.1} parent=27 // pred_check_branch
          %167 = sbr.rel (%p165) target = $region32
        $region31: #{_distmask_padded.1} parent=27 // pred_region
          %168 = dma.done %s161, 256
        $region32: #{_distmask_padded.1} parent=27 // pred_fallthru
          _
        %s169 = sand.u32 %s56, 1
        %s170 = scalar_lea.sflag [#allocation6], %s169
        %s171 = sand.u32 %s56, 1
        %s172 = smul.addr %s171, 2
        %s173 = scalar_lea.vmem [#allocation5], %s172
        // Predicated region
        $region33: #{_distmask_padded.1} parent=27 // pred_check
          %p174 = pneg %p69
        $region34: #{_distmask_padded.1} parent=27 // pred_check_branch
          %176 = sbr.rel (%p174) target = $region36
        $region35: #{_distmask_padded.1} parent=27 // pred_region
          %177 = dma.done %s170, 32
        $region36: #{_distmask_padded.1} parent=27 // pred_fallthru
          _
        %s178 = sand.u32 %s30, 1
        %s179 = scalar_lea.sflag [#allocation3], %s178
        %s180 = sand.u32 %s30, 1
        %s181 = smul.addr %s180, 16
        %s182 = scalar_lea.vmem [#allocation2], %s181
        %p183 = pneg %p43
        %p184 = pneg %p40
        %s185 = sand.u32 %s56, 1
        %s186 = scalar_lea.sflag [#allocation6], %s185
        %s187 = sand.u32 %s56, 1
        %s188 = smul.addr %s187, 2
        %s189 = scalar_lea.vmem [#allocation5], %s188
        %p190 = pneg %p69
        %p191 = pneg %p66
        %p192 = pneg %p95
        %p193 = pneg %p92
        %s194 = sand.u32 %s82, 1
        %s195 = scalar_lea.sflag [#allocation4], %s194
        %s196 = sand.u32 %s82, 1
        %s197 = smul.addr %s196, 16
        %s198 = scalar_lea.vmem [#allocation7], %s197
        %v199 = vlaneseq
        %v200 = vand.u32 %v199, 127
        %v201 = vlaneseq
        %v202 = vshrl.u32 %v201, 7
        %v203 = vadd.s32 %v202, 8
        %v204 = vld [vmem:[%s164] sm:$0xff]
        %v205 = vld [vmem:[%s164 + $0x8] sm:$0xff]
        %vm206 = vcmp.eq.s32.totalorder %v200, 0
        %v207 = vsel %vm206, 1, 0
        %vm208 = vcmp.eq.s32.totalorder %v207, 1
        %v209 = vsel %vm208, %v204, 1e+09
        %v210 = vsel %vm208, %v205, 1e+09
        %211 = vmin.xlane.f32.xlu0 %v209
        %v212 = vpop.xlane.xlu0 %211
        %213 = vmin.xlane.f32.xlu0 %v210
        %v214 = vpop.xlane.xlu0 %213
        %vm215 = vcmp.eq.s32.totalorder %v202, 0
        %vm216 = vcmp.eq.s32.totalorder %v203, 0
        %v217 = vsel %vm215, 1, 0
        %v218 = vsel %vm216, 1, 0
        %vm219 = vcmp.eq.s32.totalorder %v217, 1
        %vm220 = vcmp.eq.s32.totalorder %v218, 1
        %v221 = vsel %vm219, %v204, 1e+09
        %v222 = vsel %vm220, %v205, 1e+09
        %v223 = vmin.f32 %v221, %v222
        %v224 = vrot.slane %v223, 4
        %v225 = vmin.f32 %v223, %v224
        %v226 = vrot.slane %v225, 2
        %v227 = vmin.f32 %v225, %v226
        %v228 = vrot.slane %v227, 1
        %v229 = vmin.f32 %v227, %v228
        %v230 = vadd.f32 %v212, %v229
        %v231 = vadd.f32 %v214, %v229
        %v232 = vmin.f32 %v204, %v230
        %v233 = vmin.f32 %v205, %v231
        %vm234 = vcmp.eq.s32.totalorder %v200, 1
        %v235 = vsel %vm234, 1, 0
        %vm236 = vcmp.eq.s32.totalorder %v235, 1
        %v237 = vsel %vm236, %v232, 1e+09
        %v238 = vsel %vm236, %v233, 1e+09
        %239 = vmin.xlane.f32.xlu0 %v237
        %v240 = vpop.xlane.xlu0 %239
        %241 = vmin.xlane.f32.xlu0 %v238
        %v242 = vpop.xlane.xlu0 %241
        %vm243 = vcmp.eq.s32.totalorder %v202, 1
        %vm244 = vcmp.eq.s32.totalorder %v203, 1
        %v245 = vsel %vm243, 1, 0
        %v246 = vsel %vm244, 1, 0
        %vm247 = vcmp.eq.s32.totalorder %v245, 1
        %vm248 = vcmp.eq.s32.totalorder %v246, 1
        %v249 = vsel %vm247, %v232, 1e+09
        %v250 = vsel %vm248, %v233, 1e+09
        %v251 = vmin.f32 %v249, %v250
        %v252 = vrot.slane %v251, 4
        %v253 = vmin.f32 %v251, %v252
        %v254 = vrot.slane %v253, 2
        %v255 = vmin.f32 %v253, %v254
        %v256 = vrot.slane %v255, 1
        %v257 = vmin.f32 %v255, %v256
        %v258 = vadd.f32 %v240, %v257
        %v259 = vadd.f32 %v242, %v257
        %v260 = vmin.f32 %v232, %v258
        %v261 = vmin.f32 %v233, %v259
        %vm262 = vcmp.eq.s32.totalorder %v200, 2
        %v263 = vsel %vm262, 1, 0
        %vm264 = vcmp.eq.s32.totalorder %v263, 1
        %v265 = vsel %vm264, %v260, 1e+09
        %v266 = vsel %vm264, %v261, 1e+09
        %267 = vmin.xlane.f32.xlu0 %v265
        %v268 = vpop.xlane.xlu0 %267
        %269 = vmin.xlane.f32.xlu0 %v266
        %v270 = vpop.xlane.xlu0 %269
        %vm271 = vcmp.eq.s32.totalorder %v202, 2
        %vm272 = vcmp.eq.s32.totalorder %v203, 2
        %v273 = vsel %vm271, 1, 0
        %v274 = vsel %vm272, 1, 0
        %vm275 = vcmp.eq.s32.totalorder %v273, 1
        %vm276 = vcmp.eq.s32.totalorder %v274, 1
        %v277 = vsel %vm275, %v260, 1e+09
        %v278 = vsel %vm276, %v261, 1e+09
        %v279 = vmin.f32 %v277, %v278
        %v280 = vrot.slane %v279, 4
        %v281 = vmin.f32 %v279, %v280
        %v282 = vrot.slane %v281, 2
        %v283 = vmin.f32 %v281, %v282
        %v284 = vrot.slane %v283, 1
        %v285 = vmin.f32 %v283, %v284
        %v286 = vadd.f32 %v268, %v285
        %v287 = vadd.f32 %v270, %v285
        %v288 = vmin.f32 %v260, %v286
        %v289 = vmin.f32 %v261, %v287
        %vm290 = vcmp.eq.s32.totalorder %v200, 3
        %v291 = vsel %vm290, 1, 0
        %vm292 = vcmp.eq.s32.totalorder %v291, 1
        %v293 = vsel %vm292, %v288, 1e+09
        %v294 = vsel %vm292, %v289, 1e+09
        %295 = vmin.xlane.f32.xlu0 %v293
        %v296 = vpop.xlane.xlu0 %295
        %297 = vmin.xlane.f32.xlu0 %v294
        %v298 = vpop.xlane.xlu0 %297
        %vm299 = vcmp.eq.s32.totalorder %v202, 3
        %vm300 = vcmp.eq.s32.totalorder %v203, 3
        %v301 = vsel %vm299, 1, 0
        %v302 = vsel %vm300, 1, 0
        %vm303 = vcmp.eq.s32.totalorder %v301, 1
        %vm304 = vcmp.eq.s32.totalorder %v302, 1
        %v305 = vsel %vm303, %v288, 1e+09
        %v306 = vsel %vm304, %v289, 1e+09
        %v307 = vmin.f32 %v305, %v306
        %v308 = vrot.slane %v307, 4
        %v309 = vmin.f32 %v307, %v308
        %v310 = vrot.slane %v309, 2
        %v311 = vmin.f32 %v309, %v310
        %v312 = vrot.slane %v311, 1
        %v313 = vmin.f32 %v311, %v312
        %v314 = vadd.f32 %v296, %v313
        %v315 = vadd.f32 %v298, %v313
        %v316 = vmin.f32 %v288, %v314
        %v317 = vmin.f32 %v289, %v315
        %vm318 = vcmp.eq.s32.totalorder %v200, 4
        %v319 = vsel %vm318, 1, 0
        %vm320 = vcmp.eq.s32.totalorder %v319, 1
        %v321 = vsel %vm320, %v316, 1e+09
        %v322 = vsel %vm320, %v317, 1e+09
        %323 = vmin.xlane.f32.xlu0 %v321
        %v324 = vpop.xlane.xlu0 %323
        %325 = vmin.xlane.f32.xlu0 %v322
        %v326 = vpop.xlane.xlu0 %325
        %vm327 = vcmp.eq.s32.totalorder %v202, 4
        %vm328 = vcmp.eq.s32.totalorder %v203, 4
        %v329 = vsel %vm327, 1, 0
        %v330 = vsel %vm328, 1, 0
        %vm331 = vcmp.eq.s32.totalorder %v329, 1
        %vm332 = vcmp.eq.s32.totalorder %v330, 1
        %v333 = vsel %vm331, %v316, 1e+09
        %v334 = vsel %vm332, %v317, 1e+09
        %v335 = vmin.f32 %v333, %v334
        %v336 = vrot.slane %v335, 4
        %v337 = vmin.f32 %v335, %v336
        %v338 = vrot.slane %v337, 2
        %v339 = vmin.f32 %v337, %v338
        %v340 = vrot.slane %v339, 1
        %v341 = vmin.f32 %v339, %v340
        %v342 = vadd.f32 %v324, %v341
        %v343 = vadd.f32 %v326, %v341
        %v344 = vmin.f32 %v316, %v342
        %v345 = vmin.f32 %v317, %v343
        %vm346 = vcmp.eq.s32.totalorder %v200, 5
        %v347 = vsel %vm346, 1, 0
        %vm348 = vcmp.eq.s32.totalorder %v347, 1
        %v349 = vsel %vm348, %v344, 1e+09
        %v350 = vsel %vm348, %v345, 1e+09
        %351 = vmin.xlane.f32.xlu0 %v349
        %v352 = vpop.xlane.xlu0 %351
        %353 = vmin.xlane.f32.xlu0 %v350
        %v354 = vpop.xlane.xlu0 %353
        %vm355 = vcmp.eq.s32.totalorder %v202, 5
        %vm356 = vcmp.eq.s32.totalorder %v203, 5
        %v357 = vsel %vm355, 1, 0
        %v358 = vsel %vm356, 1, 0
        %vm359 = vcmp.eq.s32.totalorder %v357, 1
        %vm360 = vcmp.eq.s32.totalorder %v358, 1
        %v361 = vsel %vm359, %v344, 1e+09
        %v362 = vsel %vm360, %v345, 1e+09
        %v363 = vmin.f32 %v361, %v362
        %v364 = vrot.slane %v363, 4
        %v365 = vmin.f32 %v363, %v364
        %v366 = vrot.slane %v365, 2
        %v367 = vmin.f32 %v365, %v366
        %v368 = vrot.slane %v367, 1
        %v369 = vmin.f32 %v367, %v368
        %v370 = vadd.f32 %v352, %v369
        %v371 = vadd.f32 %v354, %v369
        %v372 = vmin.f32 %v344, %v370
        %v373 = vmin.f32 %v345, %v371
        %vm374 = vcmp.eq.s32.totalorder %v200, 6
        %v375 = vsel %vm374, 1, 0
        %vm376 = vcmp.eq.s32.totalorder %v375, 1
        %v377 = vsel %vm376, %v372, 1e+09
        %v378 = vsel %vm376, %v373, 1e+09
        %379 = vmin.xlane.f32.xlu0 %v377
        %v380 = vpop.xlane.xlu0 %379
        %381 = vmin.xlane.f32.xlu0 %v378
        %v382 = vpop.xlane.xlu0 %381
        %vm383 = vcmp.eq.s32.totalorder %v202, 6
        %vm384 = vcmp.eq.s32.totalorder %v203, 6
        %v385 = vsel %vm383, 1, 0
        %v386 = vsel %vm384, 1, 0
        %vm387 = vcmp.eq.s32.totalorder %v385, 1
        %vm388 = vcmp.eq.s32.totalorder %v386, 1
        %v389 = vsel %vm387, %v372, 1e+09
        %v390 = vsel %vm388, %v373, 1e+09
        %v391 = vmin.f32 %v389, %v390
        %v392 = vrot.slane %v391, 4
        %v393 = vmin.f32 %v391, %v392
        %v394 = vrot.slane %v393, 2
        %v395 = vmin.f32 %v393, %v394
        %v396 = vrot.slane %v395, 1
        %v397 = vmin.f32 %v395, %v396
        %v398 = vadd.f32 %v380, %v397
        %v399 = vadd.f32 %v382, %v397
        %v400 = vmin.f32 %v372, %v398
        %v401 = vmin.f32 %v373, %v399
        %vm402 = vcmp.eq.s32.totalorder %v200, 7
        %v403 = vsel %vm402, 1, 0
        %vm404 = vcmp.eq.s32.totalorder %v403, 1
        %v405 = vsel %vm404, %v400, 1e+09
        %v406 = vsel %vm404, %v401, 1e+09
        %407 = vmin.xlane.f32.xlu0 %v405
        %v408 = vpop.xlane.xlu0 %407
        %409 = vmin.xlane.f32.xlu0 %v406
        %v410 = vpop.xlane.xlu0 %409
        %vm411 = vcmp.eq.s32.totalorder %v202, 7
        %vm412 = vcmp.eq.s32.totalorder %v203, 7
        %v413 = vsel %vm411, 1, 0
        %v414 = vsel %vm412, 1, 0
        %vm415 = vcmp.eq.s32.totalorder %v413, 1
        %vm416 = vcmp.eq.s32.totalorder %v414, 1
        %v417 = vsel %vm415, %v400, 1e+09
        %v418 = vsel %vm416, %v401, 1e+09
        %v419 = vmin.f32 %v417, %v418
        %v420 = vrot.slane %v419, 4
        %v421 = vmin.f32 %v419, %v420
        %v422 = vrot.slane %v421, 2
        %v423 = vmin.f32 %v421, %v422
        %v424 = vrot.slane %v423, 1
        %v425 = vmin.f32 %v423, %v424
        %v426 = vadd.f32 %v408, %v425
        %v427 = vadd.f32 %v410, %v425
        %v428 = vmin.f32 %v400, %v426
        %v429 = vmin.f32 %v401, %v427
        %vm430 = vcmp.eq.s32.totalorder %v200, 8
        %v431 = vsel %vm430, 1, 0
        %vm432 = vcmp.eq.s32.totalorder %v431, 1
        %v433 = vsel %vm432, %v428, 1e+09
        %v434 = vsel %vm432, %v429, 1e+09
        %435 = vmin.xlane.f32.xlu0 %v433
        %v436 = vpop.xlane.xlu0 %435
        %437 = vmin.xlane.f32.xlu0 %v434
        %v438 = vpop.xlane.xlu0 %437
        %vm439 = vcmp.eq.s32.totalorder %v202, 8
        %vm440 = vcmp.eq.s32.totalorder %v203, 8
        %v441 = vsel %vm439, 1, 0
        %v442 = vsel %vm440, 1, 0
        %vm443 = vcmp.eq.s32.totalorder %v441, 1
        %vm444 = vcmp.eq.s32.totalorder %v442, 1
        %v445 = vsel %vm443, %v428, 1e+09
        %v446 = vsel %vm444, %v429, 1e+09
        %v447 = vmin.f32 %v445, %v446
        %v448 = vrot.slane %v447, 4
        %v449 = vmin.f32 %v447, %v448
        %v450 = vrot.slane %v449, 2
        %v451 = vmin.f32 %v449, %v450
        %v452 = vrot.slane %v451, 1
        %v453 = vmin.f32 %v451, %v452
        %v454 = vadd.f32 %v436, %v453
        %v455 = vadd.f32 %v438, %v453
        %v456 = vmin.f32 %v428, %v454
        %v457 = vmin.f32 %v429, %v455
        %vm458 = vcmp.eq.s32.totalorder %v200, 9
        %v459 = vsel %vm458, 1, 0
        %vm460 = vcmp.eq.s32.totalorder %v459, 1
        %v461 = vsel %vm460, %v456, 1e+09
        %v462 = vsel %vm460, %v457, 1e+09
        %463 = vmin.xlane.f32.xlu0 %v461
        %v464 = vpop.xlane.xlu0 %463
        %465 = vmin.xlane.f32.xlu0 %v462
        %v466 = vpop.xlane.xlu0 %465
        %vm467 = vcmp.eq.s32.totalorder %v202, 9
        %vm468 = vcmp.eq.s32.totalorder %v203, 9
        %v469 = vsel %vm467, 1, 0
        %v470 = vsel %vm468, 1, 0
        %vm471 = vcmp.eq.s32.totalorder %v469, 1
        %vm472 = vcmp.eq.s32.totalorder %v470, 1
        %v473 = vsel %vm471, %v456, 1e+09
        %v474 = vsel %vm472, %v457, 1e+09
        %v475 = vmin.f32 %v473, %v474
        %v476 = vrot.slane %v475, 4
        %v477 = vmin.f32 %v475, %v476
        %v478 = vrot.slane %v477, 2
        %v479 = vmin.f32 %v477, %v478
        %v480 = vrot.slane %v479, 1
        %v481 = vmin.f32 %v479, %v480
        %v482 = vadd.f32 %v464, %v481
        %v483 = vadd.f32 %v466, %v481
        %v484 = vmin.f32 %v456, %v482
        %v485 = vmin.f32 %v457, %v483
        %vm486 = vcmp.eq.s32.totalorder %v200, 10
        %v487 = vsel %vm486, 1, 0
        %vm488 = vcmp.eq.s32.totalorder %v487, 1
        %v489 = vsel %vm488, %v484, 1e+09
        %v490 = vsel %vm488, %v485, 1e+09
        %491 = vmin.xlane.f32.xlu0 %v489
        %v492 = vpop.xlane.xlu0 %491
        %493 = vmin.xlane.f32.xlu0 %v490
        %v494 = vpop.xlane.xlu0 %493
        %vm495 = vcmp.eq.s32.totalorder %v202, 10
        %vm496 = vcmp.eq.s32.totalorder %v203, 10
        %v497 = vsel %vm495, 1, 0
        %v498 = vsel %vm496, 1, 0
        %vm499 = vcmp.eq.s32.totalorder %v497, 1
        %vm500 = vcmp.eq.s32.totalorder %v498, 1
        %v501 = vsel %vm499, %v484, 1e+09
        %v502 = vsel %vm500, %v485, 1e+09
        %v503 = vmin.f32 %v501, %v502
        %v504 = vrot.slane %v503, 4
        %v505 = vmin.f32 %v503, %v504
        %v506 = vrot.slane %v505, 2
        %v507 = vmin.f32 %v505, %v506
        %v508 = vrot.slane %v507, 1
        %v509 = vmin.f32 %v507, %v508
        %v510 = vadd.f32 %v492, %v509
        %v511 = vadd.f32 %v494, %v509
        %v512 = vmin.f32 %v484, %v510
        %v513 = vmin.f32 %v485, %v511
        %vm514 = vcmp.eq.s32.totalorder %v200, 11
        %v515 = vsel %vm514, 1, 0
        %vm516 = vcmp.eq.s32.totalorder %v515, 1
        %v517 = vsel %vm516, %v512, 1e+09
        %v518 = vsel %vm516, %v513, 1e+09
        %519 = vmin.xlane.f32.xlu0 %v517
        %v520 = vpop.xlane.xlu0 %519
        %521 = vmin.xlane.f32.xlu0 %v518
        %v522 = vpop.xlane.xlu0 %521
        %vm523 = vcmp.eq.s32.totalorder %v202, 11
        %vm524 = vcmp.eq.s32.totalorder %v203, 11
        %v525 = vsel %vm523, 1, 0
        %v526 = vsel %vm524, 1, 0
        %vm527 = vcmp.eq.s32.totalorder %v525, 1
        %vm528 = vcmp.eq.s32.totalorder %v526, 1
        %v529 = vsel %vm527, %v512, 1e+09
        %v530 = vsel %vm528, %v513, 1e+09
        %v531 = vmin.f32 %v529, %v530
        %v532 = vrot.slane %v531, 4
        %v533 = vmin.f32 %v531, %v532
        %v534 = vrot.slane %v533, 2
        %v535 = vmin.f32 %v533, %v534
        %v536 = vrot.slane %v535, 1
        %v537 = vmin.f32 %v535, %v536
        %v538 = vadd.f32 %v520, %v537
        %v539 = vadd.f32 %v522, %v537
        %v540 = vmin.f32 %v512, %v538
        %v541 = vmin.f32 %v513, %v539
        %vm542 = vcmp.eq.s32.totalorder %v200, 12
        %v543 = vsel %vm542, 1, 0
        %vm544 = vcmp.eq.s32.totalorder %v543, 1
        %v545 = vsel %vm544, %v540, 1e+09
        %v546 = vsel %vm544, %v541, 1e+09
        %547 = vmin.xlane.f32.xlu0 %v545
        %v548 = vpop.xlane.xlu0 %547
        %549 = vmin.xlane.f32.xlu0 %v546
        %v550 = vpop.xlane.xlu0 %549
        %vm551 = vcmp.eq.s32.totalorder %v202, 12
        %vm552 = vcmp.eq.s32.totalorder %v203, 12
        %v553 = vsel %vm551, 1, 0
        %v554 = vsel %vm552, 1, 0
        %vm555 = vcmp.eq.s32.totalorder %v553, 1
        %vm556 = vcmp.eq.s32.totalorder %v554, 1
        %v557 = vsel %vm555, %v540, 1e+09
        %v558 = vsel %vm556, %v541, 1e+09
        %v559 = vmin.f32 %v557, %v558
        %v560 = vrot.slane %v559, 4
        %v561 = vmin.f32 %v559, %v560
        %v562 = vrot.slane %v561, 2
        %v563 = vmin.f32 %v561, %v562
        %v564 = vrot.slane %v563, 1
        %v565 = vmin.f32 %v563, %v564
        %v566 = vadd.f32 %v548, %v565
        %v567 = vadd.f32 %v550, %v565
        %v568 = vmin.f32 %v540, %v566
        %v569 = vmin.f32 %v541, %v567
        %vm570 = vcmp.eq.s32.totalorder %v200, 13
        %v571 = vsel %vm570, 1, 0
        %vm572 = vcmp.eq.s32.totalorder %v571, 1
        %v573 = vsel %vm572, %v568, 1e+09
        %v574 = vsel %vm572, %v569, 1e+09
        %575 = vmin.xlane.f32.xlu0 %v573
        %v576 = vpop.xlane.xlu0 %575
        %577 = vmin.xlane.f32.xlu0 %v574
        %v578 = vpop.xlane.xlu0 %577
        %vm579 = vcmp.eq.s32.totalorder %v202, 13
        %vm580 = vcmp.eq.s32.totalorder %v203, 13
        %v581 = vsel %vm579, 1, 0
        %v582 = vsel %vm580, 1, 0
        %vm583 = vcmp.eq.s32.totalorder %v581, 1
        %vm584 = vcmp.eq.s32.totalorder %v582, 1
        %v585 = vsel %vm583, %v568, 1e+09
        %v586 = vsel %vm584, %v569, 1e+09
        %v587 = vmin.f32 %v585, %v586
        %v588 = vrot.slane %v587, 4
        %v589 = vmin.f32 %v587, %v588
        %v590 = vrot.slane %v589, 2
        %v591 = vmin.f32 %v589, %v590
        %v592 = vrot.slane %v591, 1
        %v593 = vmin.f32 %v591, %v592
        %v594 = vadd.f32 %v576, %v593
        %v595 = vadd.f32 %v578, %v593
        %v596 = vmin.f32 %v568, %v594
        %v597 = vmin.f32 %v569, %v595
        %vm598 = vcmp.eq.s32.totalorder %v200, 14
        %v599 = vsel %vm598, 1, 0
        %vm600 = vcmp.eq.s32.totalorder %v599, 1
        %v601 = vsel %vm600, %v596, 1e+09
        %v602 = vsel %vm600, %v597, 1e+09
        %603 = vmin.xlane.f32.xlu0 %v601
        %v604 = vpop.xlane.xlu0 %603
        %605 = vmin.xlane.f32.xlu0 %v602
        %v606 = vpop.xlane.xlu0 %605
        %vm607 = vcmp.eq.s32.totalorder %v202, 14
        %vm608 = vcmp.eq.s32.totalorder %v203, 14
        %v609 = vsel %vm607, 1, 0
        %v610 = vsel %vm608, 1, 0
        %vm611 = vcmp.eq.s32.totalorder %v609, 1
        %vm612 = vcmp.eq.s32.totalorder %v610, 1
        %v613 = vsel %vm611, %v596, 1e+09
        %v614 = vsel %vm612, %v597, 1e+09
        %v615 = vmin.f32 %v613, %v614
        %v616 = vrot.slane %v615, 4
        %v617 = vmin.f32 %v615, %v616
        %v618 = vrot.slane %v617, 2
        %v619 = vmin.f32 %v617, %v618
        %v620 = vrot.slane %v619, 1
        %v621 = vmin.f32 %v619, %v620
        %v622 = vadd.f32 %v604, %v621
        %v623 = vadd.f32 %v606, %v621
        %v624 = vmin.f32 %v596, %v622
        %v625 = vmin.f32 %v597, %v623
        %vm626 = vcmp.eq.s32.totalorder %v200, 15
        %v627 = vsel %vm626, 1, 0
        %vm628 = vcmp.eq.s32.totalorder %v627, 1
        %v629 = vsel %vm628, %v624, 1e+09
        %v630 = vsel %vm628, %v625, 1e+09
        %631 = vmin.xlane.f32.xlu0 %v629
        %v632 = vpop.xlane.xlu0 %631
        %633 = vmin.xlane.f32.xlu0 %v630
        %v634 = vpop.xlane.xlu0 %633
        %vm635 = vcmp.eq.s32.totalorder %v202, 15
        %vm636 = vcmp.eq.s32.totalorder %v203, 15
        %v637 = vsel %vm635, 1, 0
        %v638 = vsel %vm636, 1, 0
        %vm639 = vcmp.eq.s32.totalorder %v637, 1
        %vm640 = vcmp.eq.s32.totalorder %v638, 1
        %v641 = vsel %vm639, %v624, 1e+09
        %v642 = vsel %vm640, %v625, 1e+09
        %v643 = vmin.f32 %v641, %v642
        %v644 = vrot.slane %v643, 4
        %v645 = vmin.f32 %v643, %v644
        %v646 = vrot.slane %v645, 2
        %v647 = vmin.f32 %v645, %v646
        %v648 = vrot.slane %v647, 1
        %v649 = vmin.f32 %v647, %v648
        %v650 = vadd.f32 %v632, %v649
        %v651 = vadd.f32 %v634, %v649
        %v652 = vmin.f32 %v624, %v650
        %v653 = vmin.f32 %v625, %v651
        %v654 = vld [vmem:[%s173] sm:$0x1]
        %v655 = vld [vmem:[%s173 + $0x1] sm:$0x1]
        %vm656 = vcmp.ge.f32.partialorder %v654, %v655
        %v657 = vsel %vm656, 1, 0
        %v658 = vcvt.s32.f32 %v657
        %vm659 = vcmp.ge.f32.partialorder %v652, 5e+08
        %vm660 = vcmp.ge.f32.partialorder %v653, 5e+08
        %v661 = vsel %vm659, inf, %v652
        %v662 = vsel %vm660, inf, %v653
        %v663 = vlaneseq
        %v664 = vshrl.u32 %v663, 7
        %v665 = vsub.s32 0, %v664
        %v666 = vrot.slane %v658, %v665
        %v667 = vmul.f32 %v661, %v666
        %v668 = vmul.f32 %v662, %v666
        %669 = vst [vmem:[%s198] sm:$0xff] %v667
        %670 = vst [vmem:[%s198 + $0x8] sm:$0xff] %v668
        %s671 = sand.u32 %s82, 1
        %s672 = scalar_lea.sflag [#allocation4], %s671
        %s673 = sand.u32 %s82, 1
        %s674 = smul.addr %s673, 16
        %s675 = scalar_lea.vmem [#allocation7], %s674
        // Predicated region
        $region37: #{_distmask_padded.1} parent=27 // pred_check
          %p676 = pneg %p92
        $region38: #{_distmask_padded.1} parent=27 // pred_check_branch
          %678 = sbr.rel (%p676) target = $region40
        $region39: #{_distmask_padded.1} parent=27 // pred_region
          %s680 = ssub.s32 256, 256
          %681 = vsyncadd %s672, %s680
          %s682 = smul.addr %s22, 2
          %s683 = smul.addr %s682, 128
          %s684 = scalar_lea.hbm %s2, %s683
          %s685 = sshll.u32 %s675, 4
          %s686 = int_to_ptr.vmem [resolvable:$true] %s685
          %691 = dma.vmem_to_hbm [thread:$0]  %s686, 256, %s684, %s672, 128, 128, 8
        $region40: #{_distmask_padded.1} parent=27 // pred_fallthru
          _
      $region28: #{_distmask_padded.1} parent=5 // pred_fallthru
        _
      %p692 = scmp.le.s32.totalorder 2, %s17
      // Predicated region
      $region41: #{_distmask_padded.1} parent=5 // pred_check
        %p693 = pneg %p692
      $region42: #{_distmask_padded.1} parent=5 // pred_check_branch
        %695 = sbr.rel (%p693) target = $region44
      $region43: #{_distmask_padded.1} parent=5 // pred_region
        %s696 = ssub.s32 %s17, 2
        // Predicated region
        $region45: #{_distmask_padded.1} parent=43 // pred_check
          %p697 = pneg %p98
        $region46: #{_distmask_padded.1} parent=43 // pred_check_branch
          %699 = sbr.rel (%p697) target = $region48
        $region47: #{_distmask_padded.1} parent=43 // pred_region
          %s700 = sand.u32 %s83, 1
          %s701 = scalar_lea.sflag [#allocation4], %s700
          %s702 = sand.u32 %s83, 1
          %s703 = smul.addr %s702, 16
          %s704 = scalar_lea.vmem [#allocation7], %s703
          %705 = dma.done %s701, 256
        $region48: #{_distmask_padded.1} parent=43 // pred_fallthru
          _
      $region44: #{_distmask_padded.1} parent=5 // pred_fallthru
        _
    $region6: #{_distmask_padded.1} parent=1 // loop_footer
      %s21 = sadd.s32 1, %s17
    $region7: #{_distmask_padded.1} parent=1 // loop_footer_branch
      %16 = sbr.rel target = $region3
    $region8: #{_distmask_padded.1} parent=1 // loop_exit
      _
    %706 = vsyncpa [#allocation3], 1
    %s707 = scalar_lea.sflag [#allocation3], 1
    %708 = vsyncpa %s707, 1
    %709 = vsyncpa [#allocation6], 1
    %s710 = scalar_lea.sflag [#allocation6], 1
    %711 = vsyncpa %s710, 1
    %712 = vsyncpa [#allocation4], 1
    %s713 = scalar_lea.sflag [#allocation4], 1
    %714 = vsyncpa %s713, 1

</llo_original>
